<compile_context>
chip_gen: v5e
topology: v5e:2x2
jax: 0.10.0
libtpu: 0.0.40
codegen_flags: <defaults>
</compile_context>

<pallas_src>
import numpy as np
import jax
import jax.numpy as jnp
from jax import lax
from jax.experimental import pallas as pl
from jax.experimental.pallas import tpu as pltpu

EPS = 1e-5
LANE = 128
_VMEM_LIMIT = 48 * 1024 * 1024     # safe for v5e/v6e (128 MiB) and v7x (64 MiB)
_TM_MAX = 512                      # row-tile size; keeps double-buffered tiles small


def _round_up(x, m):
    return (x + m - 1) // m * m


def _choose_tm(m):
    """Row tile: multiple of 16 (bf16 sublane packing), capped at _TM_MAX."""
    return min(_TM_MAX, _round_up(m, 16))


def _pad2(a, rows, cols):
    r, c = a.shape
    return jnp.pad(a, ((0, rows - r), (0, cols - c)))


# ---------------------------------------------------------------------------
# Pallas kernels
# ---------------------------------------------------------------------------
def _matmul_stats_kernel(x_ref, w_ref, z_ref, sum_ref, ssq_ref):
    """z = x @ w (bf16 in, f32 acc); accumulate per-channel sum / sum-of-sq."""
    z = jnp.dot(x_ref[...], w_ref[...], preferred_element_type=jnp.float32)
    z_ref[...] = z

    @pl.when(pl.program_id(0) == 0)
    def _init():
        sum_ref[...] = jnp.zeros_like(sum_ref)
        ssq_ref[...] = jnp.zeros_like(ssq_ref)

    sum_ref[...] += jnp.sum(z, axis=0, keepdims=True)
    ssq_ref[...] += jnp.sum(z * z, axis=0, keepdims=True)


def _bn_relu_kernel(z_ref, scale_ref, shift_ref, o_ref):
    """y = relu(z * scale + shift)  (one FMA per element, folded BN)."""
    y = z_ref[...] * scale_ref[...] + shift_ref[...]
    o_ref[...] = jnp.maximum(y, 0.0).astype(o_ref.dtype)


def _bn2_add_relu_kernel(z2_ref, zs_ref, sc2_ref, scs_ref, shift_ref, o_ref):
    """y = relu(z2*scale2 + zs*scale_s + (shift2 + shift_s))."""
    y = z2_ref[...] * sc2_ref[...] + zs_ref[...] * scs_ref[...] + shift_ref[...]
    o_ref[...] = jnp.maximum(y, 0.0).astype(o_ref.dtype)


# ---------------------------------------------------------------------------
# pallas_call wrappers
# ---------------------------------------------------------------------------
def _conv_matmul_with_stats(x_cols, w_mat, tm):
    """x_cols (Mp,Kp) bf16, w_mat (Kp,Cp) bf16 -> z (Mp,Cp) f32, sum, sumsq."""
    mp, kp = x_cols.shape
    cp = w_mat.shape[1]
    grid = (mp // tm,)
    flops = 2 * mp * kp * cp
    bytes_accessed = x_cols.size * 2 + w_mat.size * 2 + mp * cp * 4 + 2 * cp * 4
    return pl.pallas_call(
        _matmul_stats_kernel,
        out_shape=(
            jax.ShapeDtypeStruct((mp, cp), jnp.float32),
            jax.ShapeDtypeStruct((1, cp), jnp.float32),
            jax.ShapeDtypeStruct((1, cp), jnp.float32),
        ),
        grid=grid,
        in_specs=[
            pl.BlockSpec((tm, kp), lambda i: (i, 0)),
            pl.BlockSpec((kp, cp), lambda i: (0, 0)),
        ],
        out_specs=(
            pl.BlockSpec((tm, cp), lambda i: (i, 0)),
            pl.BlockSpec((1, cp), lambda i: (0, 0)),   # resident accumulator
            pl.BlockSpec((1, cp), lambda i: (0, 0)),   # resident accumulator
        ),
        compiler_params=pltpu.CompilerParams(
            dimension_semantics=("arbitrary",),        # stats accumulate over M
            vmem_limit_bytes=_VMEM_LIMIT,
        ),
        cost_estimate=pl.CostEstimate(
            flops=flops, transcendentals=0, bytes_accessed=bytes_accessed),
    )(x_cols, w_mat)


def _bn_relu(z, scale, shift, tm, out_dtype):
    mp, cp = z.shape
    out_bytes = mp * cp * jnp.dtype(out_dtype).itemsize
    return pl.pallas_call(
        _bn_relu_kernel,
        out_shape=jax.ShapeDtypeStruct((mp, cp), out_dtype),
        grid=(mp // tm,),
        in_specs=[
            pl.BlockSpec((tm, cp), lambda i: (i, 0)),
            pl.BlockSpec((1, cp), lambda i: (0, 0)),
            pl.BlockSpec((1, cp), lambda i: (0, 0)),
        ],
        out_specs=pl.BlockSpec((tm, cp), lambda i: (i, 0)),
        compiler_params=pltpu.CompilerParams(
            dimension_semantics=("parallel",),
            vmem_limit_bytes=_VMEM_LIMIT,
        ),
        cost_estimate=pl.CostEstimate(
            flops=2 * mp * cp, transcendentals=0,
            bytes_accessed=mp * cp * 4 + out_bytes),
    )(z, scale, shift)


def _bn2_add_relu(z2, zs, sc2, scs, shift, tm, out_dtype):
    mp, cp = z2.shape
    out_bytes = mp * cp * jnp.dtype(out_dtype).itemsize
    return pl.pallas_call(
        _bn2_add_relu_kernel,
        out_shape=jax.ShapeDtypeStruct((mp, cp), out_dtype),
        grid=(mp // tm,),
        in_specs=[
            pl.BlockSpec((tm, cp), lambda i: (i, 0)),
            pl.BlockSpec((tm, cp), lambda i: (i, 0)),
            pl.BlockSpec((1, cp), lambda i: (0, 0)),
            pl.BlockSpec((1, cp), lambda i: (0, 0)),
            pl.BlockSpec((1, cp), lambda i: (0, 0)),
        ],
        out_specs=pl.BlockSpec((tm, cp), lambda i: (i, 0)),
        compiler_params=pltpu.CompilerParams(
            dimension_semantics=("parallel",),
            vmem_limit_bytes=_VMEM_LIMIT,
        ),
        cost_estimate=pl.CostEstimate(
            flops=4 * mp * cp, transcendentals=0,
            bytes_accessed=2 * mp * cp * 4 + out_bytes),
    )(z2, zs, sc2, scs, shift)


# ---------------------------------------------------------------------------
# Glue: im2col, weight reshape, per-channel BN constants
# ---------------------------------------------------------------------------
def _im2col(x_nhwc, ksize, stride, pad):
    """x_nhwc -> (N*Ho*Wo, ksize*ksize*C), patch order (kh, kw, C)."""
    n, h, w, c = x_nhwc.shape
    xp = jnp.pad(x_nhwc, ((0, 0), (pad, pad), (pad, pad), (0, 0)))
    ho = (h + 2 * pad - ksize) // stride + 1
    wo = (w + 2 * pad - ksize) // stride + 1
    patches = []
    for di in range(ksize):
        for dj in range(ksize):
            patches.append(
                xp[:, di:di + ho * stride:stride, dj:dj + wo * stride:stride, :])
    cols = jnp.concatenate(patches, axis=-1)
    return cols.reshape(n * ho * wo, ksize * ksize * c), (n, ho, wo)


def _conv_weight_to_mat(w_oikk):
    """PyTorch conv weight (Cout, Cin, kh, kw) -> ((kh*kw*Cin), Cout)."""
    cout, cin, kh, kw = w_oikk.shape
    return jnp.transpose(w_oikk, (2, 3, 1, 0)).reshape(kh * kw * cin, cout)


def _bn_scale_shift(sum_c, ssq_c, count, gamma_p, beta_p):
    """Fold BN into per-channel scale/shift from one-pass sums (tiny (1,C) math)."""
    mean = sum_c / count
    var = jnp.maximum(ssq_c / count - mean * mean, 0.0)   # biased batch variance
    scale = gamma_p * lax.rsqrt(var + EPS)
    shift = beta_p - mean * scale
    return scale, shift


# ---------------------------------------------------------------------------
# Forward
# ---------------------------------------------------------------------------
def restnet_down_block(x_nchw, params, stride):
    """Forward of RestNetDownBlock.  x_nchw: (N, Cin, H, W) float32."""
    st0, st1 = stride
    x_nhwc = jnp.transpose(x_nchw, (0, 2, 3, 1)).astype(jnp.float32)
    cout = params["w1"].shape[0]
    cp = _round_up(cout, LANE)

    # ---- conv1 (3x3, stride st0, pad 1) -> bn1 -> relu ----------------------
    x1_cols, (n, ho1, wo1) = _im2col(x_nhwc, 3, st0, 1)
    m1, k1 = x1_cols.shape
    kp1 = _round_up(k1, LANE)
    tm1 = _choose_tm(m1)
    mp1 = _round_up(m1, tm1)
    x1p = _pad2(x1_cols, mp1, kp1).astype(jnp.bfloat16)
    w1p = _pad2(_conv_weight_to_mat(params["w1"]), kp1, cp).astype(jnp.bfloat16)
    # NOTE: conv biases (b1/b2/bs) are intentionally NOT added: a per-channel
    # constant before BatchNorm cancels exactly when the batch mean is removed.
    z1, sum1, ssq1 = _conv_matmul_with_stats(x1p, w1p, tm1)
    scale1, shift1 = _bn_scale_shift(sum1, ssq1, float(m1),
                                     _pad2(params["g1"], 1, cp),
                                     _pad2(params["be1"], 1, cp))
    y1 = _bn_relu(z1, scale1, shift1, tm1, jnp.bfloat16)      # (mp1, cp) bf16
    y1_nhwc = y1[:m1, :cout].reshape(n, ho1, wo1, cout)

    # ---- conv2 (3x3, stride st1, pad 1) -> bn2 ------------------------------
    x2_cols, (_, ho2, wo2) = _im2col(y1_nhwc, 3, st1, 1)
    m2, k2 = x2_cols.shape
    kp2 = _round_up(k2, LANE)
    tm2 = _choose_tm(m2)
    mp2 = _round_up(m2, tm2)
    x2p = _pad2(x2_cols, mp2, kp2).astype(jnp.bfloat16)
    w2p = _pad2(_conv_weight_to_mat(params["w2"]), kp2, cp).astype(jnp.bfloat16)
    z2, sum2, ssq2 = _conv_matmul_with_stats(x2p, w2p, tm2)
    scale2, shift2 = _bn_scale_shift(sum2, ssq2, float(m2),
                                     _pad2(params["g2"], 1, cp),
                                     _pad2(params["be2"], 1, cp))

    # ---- shortcut: 1x1 conv (stride st0, pad 0) -> bn -----------------------
    xs = x_nhwc[:, ::st0, ::st0, :]
    xs_cols = xs.reshape(-1, xs.shape[-1])
    ms, ks = xs_cols.shape
    # Branch row counts must match (holds whenever the PyTorch module itself is
    # shape-consistent, e.g. stride=(2,1) or (1,1)).
    assert ms == m2, "main/shortcut spatial sizes must match (requires st1 == 1)"
    kps = _round_up(ks, LANE)
    xsp = _pad2(xs_cols, mp2, kps).astype(jnp.bfloat16)
    wsp = _pad2(_conv_weight_to_mat(params["ws"]), kps, cp).astype(jnp.bfloat16)
    zs, sums, ssqs = _conv_matmul_with_stats(xsp, wsp, tm2)
    scales, shifts = _bn_scale_shift(sums, ssqs, float(ms),
                                     _pad2(params["gs"], 1, cp),
                                     _pad2(params["bes"], 1, cp))

    # ---- bn2 + bn_shortcut + add + relu (fused, one pass over z tiles) ------
    out = _bn2_add_relu(z2, zs, scale2, scales, shift2 + shifts, tm2, jnp.float32)
    out_nhwc = out[:m2, :cout].reshape(n, ho2, wo2, cout)
    return jnp.transpose(out_nhwc, (0, 3, 1, 2))              # back to NCHW


# ---------------------------------------------------------------------------
# Pure-JAX f32 reference (PyTorch semantics, incl. conv biases)
# ---------------------------------------------------------------------------
def _ref_bn(z_nchw, g, be):
    m = jnp.mean(z_nchw, axis=(0, 2, 3), keepdims=True)
    v = jnp.mean((z_nchw - m) ** 2, axis=(0, 2, 3), keepdims=True)
    return (z_nchw - m) * lax.rsqrt(v + EPS) * g.reshape(1, -1, 1, 1) \
        + be.reshape(1, -1, 1, 1)


def _ref_conv(x, w, b, stride, pad):
    y = lax.conv_general_dilated(
        x, w, window_strides=(stride, stride),
        padding=[(pad, pad), (pad, pad)],
        dimension_numbers=("NCHW", "OIHW", "NCHW"))
    return y + b.reshape(1, -1, 1, 1)


def restnet_down_block_ref(x, p, stride):
    s0, s1 = stride
    extra = _ref_bn(_ref_conv(x, p["ws"], p["bs"].ravel(), s0, 0),
                    p["gs"].ravel(), p["bes"].ravel())
    out = _ref_conv(x, p["w1"], p["b1"].ravel(), s0, 1)
    out = jnp.maximum(_ref_bn(out, p["g1"].ravel(), p["be1"].ravel()), 0.0)
    out = _ref_conv(out, p["w2"], p["b2"].ravel(), s1, 1)
    out = _ref_bn(out, p["g2"].ravel(), p["be2"].ravel())
    return jnp.maximum(extra + out, 0.0)


# ---------------------------------------------------------------------------
if __name__ == "__main__":
    N, Cin, H, W = 2, 4, 16, 16
    Cout = 8
    stride = (2, 1)

    key = jax.random.PRNGKey(0)
    k = jax.random.split(key, 8)
    x = jax.random.normal(k[0], (N, Cin, H, W), jnp.float32)

    def ones2(c):
        return jnp.ones((1, c), jnp.float32)

    def zeros2(c):
        return jnp.zeros((1, c), jnp.float32)

    params = {
        # conv1: 3x3, Cin -> Cout
        "w1": 0.1 * jax.random.normal(k[1], (Cout, Cin, 3, 3), jnp.float32),
        "b1": 0.1 * jax.random.normal(k[2], (1, Cout), jnp.float32),
        "g1": ones2(Cout), "be1": zeros2(Cout),
        # conv2: 3x3, Cout -> Cout
        "w2": 0.1 * jax.random.normal(k[3], (Cout, Cout, 3, 3), jnp.float32),
        "b2": 0.1 * jax.random.normal(k[4], (1, Cout), jnp.float32),
        "g2": ones2(Cout), "be2": zeros2(Cout),
        # extra: 1x1, Cin -> Cout
        "ws": 0.1 * jax.random.normal(k[5], (Cout, Cin, 1, 1), jnp.float32),
        "bs": 0.1 * jax.random.normal(k[6], (1, Cout), jnp.float32),
        "gs": ones2(Cout), "bes": zeros2(Cout),
    }

    fwd = jax.jit(lambda xx, pp: restnet_down_block(xx, pp, stride))
    out = jax.block_until_ready(fwd(x, params))

    ref = jax.block_until_ready(restnet_down_block_ref(x, params, stride))
    # bf16 MXU operands (f32 accumulation) vs pure-f32 reference -> looser tol.
    np.testing.assert_allclose(np.asarray(out), np.asarray(ref),
                               rtol=5e-2, atol=5e-2)

    print("KERNEL_OK")
</pallas_src>

<mosaic_0001>
module attributes {stable_mosaic.version = 11 : i64} {
  func.func @_bn_relu_kernel(%arg0: i32, %arg1: memref<128x128xf32, #tpu.memory_space<vmem>>, %arg2: memref<1x128xf32, #tpu.memory_space<vmem>>, %arg3: memref<1x128xf32, #tpu.memory_space<vmem>>, %arg4: memref<128x128xbf16, #tpu.memory_space<vmem>>) attributes {dimension_semantics = [#tpu.dimension_semantics<parallel>], iteration_bounds = array<i64: 1>, scalar_prefetch = 0 : i64, scratch_operands = 0 : i64, tpu.core_type = #tpu.core_type<tc>, window_params = [{transform_indices = @transform_0, window_bounds = array<i64: 128, 128>}, {pipeline_mode = #tpu.pipeline_mode<synchronous>, transform_indices = @transform_1, window_bounds = array<i64: 1, 128>}, {pipeline_mode = #tpu.pipeline_mode<synchronous>, transform_indices = @transform_2, window_bounds = array<i64: 1, 128>}, {transform_indices = @transform_3, window_bounds = array<i64: 128, 128>}]} {
    %c0 = arith.constant 0 : index
    %c0_0 = arith.constant 0 : index
    %0 = vector.load %arg1[%c0, %c0_0] : memref<128x128xf32, #tpu.memory_space<vmem>>, vector<128x128xf32>
    %c0_1 = arith.constant 0 : index
    %c0_2 = arith.constant 0 : index
    %1 = vector.load %arg2[%c0_1, %c0_2] : memref<1x128xf32, #tpu.memory_space<vmem>>, vector<1x128xf32>
    %2 = vector.broadcast %1 : vector<1x128xf32> to vector<128x128xf32>
    %3 = arith.mulf %0, %2 : vector<128x128xf32>
    %c0_3 = arith.constant 0 : index
    %c0_4 = arith.constant 0 : index
    %4 = vector.load %arg3[%c0_3, %c0_4] : memref<1x128xf32, #tpu.memory_space<vmem>>, vector<1x128xf32>
    %5 = vector.broadcast %4 : vector<1x128xf32> to vector<128x128xf32>
    %6 = arith.addf %3, %5 : vector<128x128xf32>
    %cst = arith.constant 0.000000e+00 : f32
    %7 = vector.broadcast %cst : f32 to vector<128x128xf32>
    %8 = arith.maximumf %6, %7 : vector<128x128xf32>
    %9 = arith.truncf %8 : vector<128x128xf32> to vector<128x128xbf16>
    %c0_5 = arith.constant 0 : index
    %c0_6 = arith.constant 0 : index
    %10 = vector.load %arg4[%c0_5, %c0_6] : memref<128x128xbf16, #tpu.memory_space<vmem>>, vector<128x128xbf16>
    tpu.vector_store %arg4[%c0_5, %c0_6], %9 {strides = array<i32>} : memref<128x128xbf16, #tpu.memory_space<vmem>>, vector<128x128xbf16>,
    return
  }
  func.func @transform_0(%arg0: i32) -> (i32, i32) {
    %c0_i32 = arith.constant 0 : i32
    %c0_i32_0 = arith.constant 0 : i32
    return %arg0, %c0_i32 : i32, i32
  }
  func.func @transform_1(%arg0: i32) -> (i32, i32) {
    %c0_i32 = arith.constant 0 : i32
    %c0_i32_0 = arith.constant 0 : i32
    %c0_i32_1 = arith.constant 0 : i32
    return %c0_i32, %c0_i32_0 : i32, i32
  }
  func.func @transform_2(%arg0: i32) -> (i32, i32) {
    %c0_i32 = arith.constant 0 : i32
    %c0_i32_0 = arith.constant 0 : i32
    %c0_i32_1 = arith.constant 0 : i32
    return %c0_i32, %c0_i32_0 : i32, i32
  }
  func.func @transform_3(%arg0: i32) -> (i32, i32) {
    %c0_i32 = arith.constant 0 : i32
    %c0_i32_0 = arith.constant 0 : i32
    return %arg0, %c0_i32 : i32, i32
  }
}

module attributes {stable_mosaic.version = 11 : i64} {
  func.func @_matmul_stats_kernel(%arg0: i32, %arg1: memref<128x128xbf16, #tpu.memory_space<vmem>>, %arg2: memref<128x128xbf16, #tpu.memory_space<vmem>>, %arg3: memref<128x128xf32, #tpu.memory_space<vmem>>, %arg4: memref<1x128xf32, #tpu.memory_space<vmem>>, %arg5: memref<1x128xf32, #tpu.memory_space<vmem>>) attributes {dimension_semantics = [#tpu.dimension_semantics<arbitrary>], iteration_bounds = array<i64: 1>, scalar_prefetch = 0 : i64, scratch_operands = 0 : i64, tpu.core_type = #tpu.core_type<tc>, window_params = [{transform_indices = @transform_0, window_bounds = array<i64: 128, 128>}, {pipeline_mode = #tpu.pipeline_mode<synchronous>, transform_indices = @transform_1, window_bounds = array<i64: 128, 128>}, {transform_indices = @transform_2, window_bounds = array<i64: 128, 128>}, {pipeline_mode = #tpu.pipeline_mode<synchronous>, transform_indices = @transform_3, window_bounds = array<i64: 1, 128>}, {pipeline_mode = #tpu.pipeline_mode<synchronous>, transform_indices = @transform_4, window_bounds = array<i64: 1, 128>}]} {
    %c0 = arith.constant 0 : index
    %c0_0 = arith.constant 0 : index
    %0 = vector.load %arg1[%c0, %c0_0] : memref<128x128xbf16, #tpu.memory_space<vmem>>, vector<128x128xbf16>
    %c0_1 = arith.constant 0 : index
    %c0_2 = arith.constant 0 : index
    %1 = vector.load %arg2[%c0_1, %c0_2] : memref<128x128xbf16, #tpu.memory_space<vmem>>, vector<128x128xbf16>
    %cst = arith.constant dense<0.000000e+00> : vector<128x128xf32>
    %2 = tpu.matmul %0, %1, %cst {dimension_numbers = #tpu.dot_dimension_numbers<[1], [0], [0], [1], [0, 0, 1, 1], [], []>} : vector<128x128xbf16>, vector<128x128xbf16>, vector<128x128xf32> -> vector<128x128xf32>
    %c0_3 = arith.constant 0 : index
    %c0_4 = arith.constant 0 : index
    %3 = vector.load %arg3[%c0_3, %c0_4] : memref<128x128xf32, #tpu.memory_space<vmem>>, vector<128x128xf32>
    tpu.vector_store %arg3[%c0_3, %c0_4], %2 {strides = array<i32>} : memref<128x128xf32, #tpu.memory_space<vmem>>, vector<128x128xf32>,
    %c0_i32 = arith.constant 0 : i32
    %4 = arith.cmpi eq, %arg0, %c0_i32 : i32
    %5 = arith.extui %4 : i1 to i32
    %c0_i32_5 = arith.constant 0 : i32
    %6 = arith.cmpi ne, %5, %c0_i32_5 : i32
    scf.if %6 {
      %cst_16 = arith.constant 0.000000e+00 : f32
      %18 = vector.broadcast %cst_16 : f32 to vector<1x128xf32>
      %c0_17 = arith.constant 0 : index
      %c0_18 = arith.constant 0 : index
      %19 = vector.load %arg4[%c0_17, %c0_18] : memref<1x128xf32, #tpu.memory_space<vmem>>, vector<1x128xf32>
      tpu.vector_store %arg4[%c0_17, %c0_18], %18 {strides = array<i32>} : memref<1x128xf32, #tpu.memory_space<vmem>>, vector<1x128xf32>,
      %cst_19 = arith.constant 0.000000e+00 : f32
      %20 = vector.broadcast %cst_19 : f32 to vector<1x128xf32>
      %c0_20 = arith.constant 0 : index
      %c0_21 = arith.constant 0 : index
      %21 = vector.load %arg5[%c0_20, %c0_21] : memref<1x128xf32, #tpu.memory_space<vmem>>, vector<1x128xf32>
      tpu.vector_store %arg5[%c0_20, %c0_21], %20 {strides = array<i32>} : memref<1x128xf32, #tpu.memory_space<vmem>>, vector<1x128xf32>,
    } else {
    }
    %c0_6 = arith.constant 0 : index
    %c0_7 = arith.constant 0 : index
    %7 = vector.load %arg4[%c0_6, %c0_7] : memref<1x128xf32, #tpu.memory_space<vmem>>, vector<1x128xf32>
    %cst_8 = arith.constant dense<0.000000e+00> : vector<128xf32>
    %8 = vector.multi_reduction <add>, %2, %cst_8 [0] : vector<128x128xf32> to vector<128xf32>
    %9 = vector.shape_cast %8 : vector<128xf32> to vector<1x128xf32>
    %10 = arith.addf %7, %9 : vector<1x128xf32>
    %c0_9 = arith.constant 0 : index
    %c0_10 = arith.constant 0 : index
    %11 = vector.load %arg4[%c0_9, %c0_10] : memref<1x128xf32, #tpu.memory_space<vmem>>, vector<1x128xf32>
    tpu.vector_store %arg4[%c0_9, %c0_10], %10 {strides = array<i32>} : memref<1x128xf32, #tpu.memory_space<vmem>>, vector<1x128xf32>,
    %c0_11 = arith.constant 0 : index
    %c0_12 = arith.constant 0 : index
    %12 = vector.load %arg5[%c0_11, %c0_12] : memref<1x128xf32, #tpu.memory_space<vmem>>, vector<1x128xf32>
    %13 = arith.mulf %2, %2 : vector<128x128xf32>
    %cst_13 = arith.constant dense<0.000000e+00> : vector<128xf32>
    %14 = vector.multi_reduction <add>, %13, %cst_13 [0] : vector<128x128xf32> to vector<128xf32>
    %15 = vector.shape_cast %14 : vector<128xf32> to vector<1x128xf32>
    %16 = arith.addf %12, %15 : vector<1x128xf32>
    %c0_14 = arith.constant 0 : index
    %c0_15 = arith.constant 0 : index
    %17 = vector.load %arg5[%c0_14, %c0_15] : memref<1x128xf32, #tpu.memory_space<vmem>>, vector<1x128xf32>
    tpu.vector_store %arg5[%c0_14, %c0_15], %16 {strides = array<i32>} : memref<1x128xf32, #tpu.memory_space<vmem>>, vector<1x128xf32>,
    return
  }
  func.func @transform_0(%arg0: i32) -> (i32, i32) {
    %c0_i32 = arith.constant 0 : i32
    %c0_i32_0 = arith.constant 0 : i32
    return %arg0, %c0_i32 : i32, i32
  }
  func.func @transform_1(%arg0: i32) -> (i32, i32) {
    %c0_i32 = arith.constant 0 : i32
    %c0_i32_0 = arith.constant 0 : i32
    %c0_i32_1 = arith.constant 0 : i32
    return %c0_i32, %c0_i32_0 : i32, i32
  }
  func.func @transform_2(%arg0: i32) -> (i32, i32) {
    %c0_i32 = arith.constant 0 : i32
    %c0_i32_0 = arith.constant 0 : i32
    return %arg0, %c0_i32 : i32, i32
  }
  func.func @transform_3(%arg0: i32) -> (i32, i32) {
    %c0_i32 = arith.constant 0 : i32
    %c0_i32_0 = arith.constant 0 : i32
    %c0_i32_1 = arith.constant 0 : i32
    return %c0_i32, %c0_i32_0 : i32, i32
  }
  func.func @transform_4(%arg0: i32) -> (i32, i32) {
    %c0_i32 = arith.constant 0 : i32
    %c0_i32_0 = arith.constant 0 : i32
    %c0_i32_1 = arith.constant 0 : i32
    return %c0_i32, %c0_i32_0 : i32, i32
  }
}

module attributes {stable_mosaic.version = 11 : i64} {
  func.func @_bn2_add_relu_kernel(%arg0: i32, %arg1: memref<128x128xf32, #tpu.memory_space<vmem>>, %arg2: memref<128x128xf32, #tpu.memory_space<vmem>>, %arg3: memref<1x128xf32, #tpu.memory_space<vmem>>, %arg4: memref<1x128xf32, #tpu.memory_space<vmem>>, %arg5: memref<1x128xf32, #tpu.memory_space<vmem>>, %arg6: memref<128x128xf32, #tpu.memory_space<vmem>>) attributes {dimension_semantics = [#tpu.dimension_semantics<parallel>], iteration_bounds = array<i64: 1>, scalar_prefetch = 0 : i64, scratch_operands = 0 : i64, tpu.core_type = #tpu.core_type<tc>, window_params = [{transform_indices = @transform_0, window_bounds = array<i64: 128, 128>}, {transform_indices = @transform_1, window_bounds = array<i64: 128, 128>}, {pipeline_mode = #tpu.pipeline_mode<synchronous>, transform_indices = @transform_2, window_bounds = array<i64: 1, 128>}, {pipeline_mode = #tpu.pipeline_mode<synchronous>, transform_indices = @transform_3, window_bounds = array<i64: 1, 128>}, {pipeline_mode = #tpu.pipeline_mode<synchronous>, transform_indices = @transform_4, window_bounds = array<i64: 1, 128>}, {transform_indices = @transform_5, window_bounds = array<i64: 128, 128>}]} {
    %c0 = arith.constant 0 : index
    %c0_0 = arith.constant 0 : index
    %0 = vector.load %arg1[%c0, %c0_0] : memref<128x128xf32, #tpu.memory_space<vmem>>, vector<128x128xf32>
    %c0_1 = arith.constant 0 : index
    %c0_2 = arith.constant 0 : index
    %1 = vector.load %arg3[%c0_1, %c0_2] : memref<1x128xf32, #tpu.memory_space<vmem>>, vector<1x128xf32>
    %2 = vector.broadcast %1 : vector<1x128xf32> to vector<128x128xf32>
    %3 = arith.mulf %0, %2 : vector<128x128xf32>
    %c0_3 = arith.constant 0 : index
    %c0_4 = arith.constant 0 : index
    %4 = vector.load %arg2[%c0_3, %c0_4] : memref<128x128xf32, #tpu.memory_space<vmem>>, vector<128x128xf32>
    %c0_5 = arith.constant 0 : index
    %c0_6 = arith.constant 0 : index
    %5 = vector.load %arg4[%c0_5, %c0_6] : memref<1x128xf32, #tpu.memory_space<vmem>>, vector<1x128xf32>
    %6 = vector.broadcast %5 : vector<1x128xf32> to vector<128x128xf32>
    %7 = arith.mulf %4, %6 : vector<128x128xf32>
    %8 = arith.addf %3, %7 : vector<128x128xf32>
    %c0_7 = arith.constant 0 : index
    %c0_8 = arith.constant 0 : index
    %9 = vector.load %arg5[%c0_7, %c0_8] : memref<1x128xf32, #tpu.memory_space<vmem>>, vector<1x128xf32>
    %10 = vector.broadcast %9 : vector<1x128xf32> to vector<128x128xf32>
    %11 = arith.addf %8, %10 : vector<128x128xf32>
    %cst = arith.constant 0.000000e+00 : f32
    %12 = vector.broadcast %cst : f32 to vector<128x128xf32>
    %13 = arith.maximumf %11, %12 : vector<128x128xf32>
    %c0_9 = arith.constant 0 : index
    %c0_10 = arith.constant 0 : index
    %14 = vector.load %arg6[%c0_9, %c0_10] : memref<128x128xf32, #tpu.memory_space<vmem>>, vector<128x128xf32>
    tpu.vector_store %arg6[%c0_9, %c0_10], %13 {strides = array<i32>} : memref<128x128xf32, #tpu.memory_space<vmem>>, vector<128x128xf32>,
    return
  }
  func.func @transform_0(%arg0: i32) -> (i32, i32) {
    %c0_i32 = arith.constant 0 : i32
    %c0_i32_0 = arith.constant 0 : i32
    return %arg0, %c0_i32 : i32, i32
  }
  func.func @transform_1(%arg0: i32) -> (i32, i32) {
    %c0_i32 = arith.constant 0 : i32
    %c0_i32_0 = arith.constant 0 : i32
    return %arg0, %c0_i32 : i32, i32
  }
  func.func @transform_2(%arg0: i32) -> (i32, i32) {
    %c0_i32 = arith.constant 0 : i32
    %c0_i32_0 = arith.constant 0 : i32
    %c0_i32_1 = arith.constant 0 : i32
    return %c0_i32, %c0_i32_0 : i32, i32
  }
  func.func @transform_3(%arg0: i32) -> (i32, i32) {
    %c0_i32 = arith.constant 0 : i32
    %c0_i32_0 = arith.constant 0 : i32
    %c0_i32_1 = arith.constant 0 : i32
    return %c0_i32, %c0_i32_0 : i32, i32
  }
  func.func @transform_4(%arg0: i32) -> (i32, i32) {
    %c0_i32 = arith.constant 0 : i32
    %c0_i32_0 = arith.constant 0 : i32
    %c0_i32_1 = arith.constant 0 : i32
    return %c0_i32, %c0_i32_0 : i32, i32
  }
  func.func @transform_5(%arg0: i32) -> (i32, i32) {
    %c0_i32 = arith.constant 0 : i32
    %c0_i32_0 = arith.constant 0 : i32
    return %arg0, %c0_i32 : i32, i32
  }
}

</mosaic_0001>

<llo_original>
// kernel: _lambda_.6
$region0: #{_lambda_.6}
  #allocation0 [shape = 'u32[]', space=smem, size = 0x4, offset = 0x4, fixed_abs, tag = 'smem constant byte address 0x4 - core index']
  #allocation1 [shape = 'u32[72,128]{1,0:T(1,128)}', space=vmem, size = 0x9000, scoped, tag = 'internal scratch']
  %s0 = inlined_call_operand.vmem [shape: f32[128,128], index: 0, kind: input, shape index: {}]
  %s1 = inlined_call_operand.vmem [shape: f32[1,128], index: 1, kind: input, shape index: {}]
  %s2 = inlined_call_operand.vmem [shape: f32[1,128], index: 2, kind: input, shape index: {}]
  %s3 = inlined_call_operand.vmem [shape: bf16[128,128], index: 3, kind: output, shape index: {}]
  %s4 = sld [smem:[#allocation0]]
  $region22: #{_lambda_.6} parent=0
    _
  %s6 = ssub.s32 1, %s4
  %s7 = scalar_select 0, %s6, %s4
  // Predicated region
  $region2: #{_lambda_.6} parent=0 // pred_check
    _
  $region3: #{_lambda_.6} parent=0 // pred_check_branch
    %9 = sbr.rel (0) target = $region5
  $region4: #{_lambda_.6} parent=0 // pred_region
    _
  $region5: #{_lambda_.6} parent=0 // pred_fallthru
    _
  // Predicated region
  $region6: #{_lambda_.6} parent=0 // pred_check
    _
  $region7: #{_lambda_.6} parent=0 // pred_check_branch
    %11 = sbr.rel (0) target = $region9
  $region8: #{_lambda_.6} parent=0 // pred_region
    _
  $region9: #{_lambda_.6} parent=0 // pred_fallthru
    _
  // Predicated region
  $region10: #{_lambda_.6} parent=0 // pred_check
    _
  $region11: #{_lambda_.6} parent=0 // pred_check_branch
    %13 = sbr.rel (0) target = $region13
  $region12: #{_lambda_.6} parent=0 // pred_region
    _
  $region13: #{_lambda_.6} parent=0 // pred_fallthru
    _
  %v14 = vld [vmem:[%s0] sm:$0xff]
  %v15 = vld [vmem:[%s0 + $0x8] sm:$0xff]
  %v16 = vld [vmem:[%s0 + $0x10] sm:$0xff]
  %v17 = vld [vmem:[%s0 + $0x18] sm:$0xff]
  %v18 = vld [vmem:[%s0 + $0x20] sm:$0xff]
  %v19 = vld [vmem:[%s0 + $0x28] sm:$0xff]
  %v20 = vld [vmem:[%s0 + $0x30] sm:$0xff]
  %v21 = vld [vmem:[%s0 + $0x38] sm:$0xff]
  %v22 = vld [vmem:[%s0 + $0x40] sm:$0xff]
  %v23 = vld [vmem:[%s0 + $0x48] sm:$0xff]
  %v24 = vld [vmem:[%s0 + $0x50] sm:$0xff]
  %v25 = vld [vmem:[%s0 + $0x58] sm:$0xff]
  %v26 = vld [vmem:[%s0 + $0x60] sm:$0xff]
  %v27 = vld [vmem:[%s0 + $0x68] sm:$0xff]
  %v28 = vld [vmem:[%s0 + $0x70] sm:$0xff]
  %v29 = vld [vmem:[%s0 + $0x78] sm:$0xff]
  %v30 = vld [vmem:[%s1] sm:$0x1]
  %v32 = vperm.slane %v30, 0
  %v34 = vmul.f32 %v14, %v32
  %v35 = vmul.f32 %v15, %v32
  %v36 = vmul.f32 %v16, %v32
  %v37 = vmul.f32 %v17, %v32
  %v38 = vmul.f32 %v18, %v32
  %v39 = vmul.f32 %v19, %v32
  %v40 = vmul.f32 %v20, %v32
  %v41 = vmul.f32 %v21, %v32
  %v42 = vmul.f32 %v22, %v32
  %v43 = vmul.f32 %v23, %v32
  %v44 = vmul.f32 %v24, %v32
  %v45 = vmul.f32 %v25, %v32
  %v46 = vmul.f32 %v26, %v32
  %v47 = vmul.f32 %v27, %v32
  %v48 = vmul.f32 %v28, %v32
  %v49 = vmul.f32 %v29, %v32
  %v50 = vld [vmem:[%s2] sm:$0x1]
  %v52 = vperm.slane %v50, 0
  %v54 = vadd.f32 %v34, %v52
  %v55 = vadd.f32 %v35, %v52
  %v56 = vadd.f32 %v36, %v52
  %v57 = vadd.f32 %v37, %v52
  %v58 = vadd.f32 %v38, %v52
  %v59 = vadd.f32 %v39, %v52
  %v60 = vadd.f32 %v40, %v52
  %v61 = vadd.f32 %v41, %v52
  %v62 = vadd.f32 %v42, %v52
  %v63 = vadd.f32 %v43, %v52
  %v64 = vadd.f32 %v44, %v52
  %v65 = vadd.f32 %v45, %v52
  %v66 = vadd.f32 %v46, %v52
  %v67 = vadd.f32 %v47, %v52
  %v68 = vadd.f32 %v48, %v52
  %v69 = vadd.f32 %v49, %v52
  %v70 = vmax.f32 %v54, 0.0
  %v71 = vmax.f32 %v55, 0.0
  %v72 = vmax.f32 %v56, 0.0
  %v73 = vmax.f32 %v57, 0.0
  %v74 = vmax.f32 %v58, 0.0
  %v75 = vmax.f32 %v59, 0.0
  %v76 = vmax.f32 %v60, 0.0
  %v77 = vmax.f32 %v61, 0.0
  %v78 = vmax.f32 %v62, 0.0
  %v79 = vmax.f32 %v63, 0.0
  %v80 = vmax.f32 %v64, 0.0
  %v81 = vmax.f32 %v65, 0.0
  %v82 = vmax.f32 %v66, 0.0
  %v83 = vmax.f32 %v67, 0.0
  %v84 = vmax.f32 %v68, 0.0
  %v85 = vmax.f32 %v69, 0.0
  %v86 = vpack.c.bf16 %v70, %v70
  %v87 = vpack.c.bf16 %v71, %v71
  %v88 = vpack.c.bf16 %v72, %v72
  %v89 = vpack.c.bf16 %v73, %v73
  %v90 = vpack.c.bf16 %v74, %v74
  %v91 = vpack.c.bf16 %v75, %v75
  %v92 = vpack.c.bf16 %v76, %v76
  %v93 = vpack.c.bf16 %v77, %v77
  %v94 = vpack.c.bf16 %v78, %v78
  %v95 = vpack.c.bf16 %v79, %v79
  %v96 = vpack.c.bf16 %v80, %v80
  %v97 = vpack.c.bf16 %v81, %v81
  %v98 = vpack.c.bf16 %v82, %v82
  %v99 = vpack.c.bf16 %v83, %v83
  %v100 = vpack.c.bf16 %v84, %v84
  %v101 = vpack.c.bf16 %v85, %v85
  %102 = vst [vmem:[%s3] sm:$0xf] %v86
  %103 = vst [vmem:[%s3 + $0x4] sm:$0xf] %v87
  %104 = vst [vmem:[%s3 + $0x8] sm:$0xf] %v88
  %105 = vst [vmem:[%s3 + $0xc] sm:$0xf] %v89
  %106 = vst [vmem:[%s3 + $0x10] sm:$0xf] %v90
  %107 = vst [vmem:[%s3 + $0x14] sm:$0xf] %v91
  %108 = vst [vmem:[%s3 + $0x18] sm:$0xf] %v92
  %109 = vst [vmem:[%s3 + $0x1c] sm:$0xf] %v93
  %110 = vst [vmem:[%s3 + $0x20] sm:$0xf] %v94
  %111 = vst [vmem:[%s3 + $0x24] sm:$0xf] %v95
  %112 = vst [vmem:[%s3 + $0x28] sm:$0xf] %v96
  %113 = vst [vmem:[%s3 + $0x2c] sm:$0xf] %v97
  %114 = vst [vmem:[%s3 + $0x30] sm:$0xf] %v98
  %115 = vst [vmem:[%s3 + $0x34] sm:$0xf] %v99
  %116 = vst [vmem:[%s3 + $0x38] sm:$0xf] %v100
  %117 = vst [vmem:[%s3 + $0x3c] sm:$0xf] %v101
  // Predicated region
  $region14: #{_lambda_.6} parent=0 // pred_check
    _
  $region15: #{_lambda_.6} parent=0 // pred_check_branch
    %119 = sbr.rel (0) target = $region17
  $region16: #{_lambda_.6} parent=0 // pred_region
    _
  $region17: #{_lambda_.6} parent=0 // pred_fallthru
    _
  // Predicated region
  $region18: #{_lambda_.6} parent=0 // pred_check
    _
  $region19: #{_lambda_.6} parent=0 // pred_check_branch
    %121 = sbr.rel (0) target = $region21
  $region20: #{_lambda_.6} parent=0 // pred_region
    _
  $region21: #{_lambda_.6} parent=0 // pred_fallthru
    _

// kernel: _lambda_.5
$region0: #{_lambda_.5}
  #allocation0 [shape = 'u32[]', space=smem, size = 0x4, offset = 0x4, fixed_abs, tag = 'smem constant byte address 0x4 - core index']
  #allocation1 [shape = 'u32[72,128]{1,0:T(1,128)}', space=vmem, size = 0x9000, scoped, tag = 'internal scratch']
  %s0 = inlined_call_operand.vmem [shape: bf16[128,128], index: 0, kind: input, shape index: {}]
  %s1 = inlined_call_operand.vmem [shape: bf16[128,128], index: 1, kind: input, shape index: {}]
  %s2 = inlined_call_operand.vmem [shape: f32[128,128], index: 2, kind: output, shape index: {0}]
  %s3 = inlined_call_operand.vmem [shape: f32[1,128], index: 3, kind: output, shape index: {1}]
  %s4 = inlined_call_operand.vmem [shape: f32[1,128], index: 4, kind: output, shape index: {2}]
  %5 = xla_tuple %s2, %s3, %s4
  %s6 = sld [smem:[#allocation0]]
  $region38: #{_lambda_.5} parent=0
    _
  %s8 = ssub.s32 1, %s6
  %s9 = scalar_select 0, %s8, %s6
  // Predicated region
  $region2: #{_lambda_.5} parent=0 // pred_check
    _
  $region3: #{_lambda_.5} parent=0 // pred_check_branch
    %11 = sbr.rel (0) target = $region5
  $region4: #{_lambda_.5} parent=0 // pred_region
    _
  $region5: #{_lambda_.5} parent=0 // pred_fallthru
    _
  // Predicated region
  $region6: #{_lambda_.5} parent=0 // pred_check
    _
  $region7: #{_lambda_.5} parent=0 // pred_check_branch
    %13 = sbr.rel (0) target = $region9
  $region8: #{_lambda_.5} parent=0 // pred_region
    _
  $region9: #{_lambda_.5} parent=0 // pred_fallthru
    _
  %v14 = vld [vmem:[%s0] sm:$0xf]
  %v15 = vld [vmem:[%s0 + $0x4] sm:$0xf]
  %v16 = vld [vmem:[%s0 + $0x8] sm:$0xf]
  %v17 = vld [vmem:[%s0 + $0xc] sm:$0xf]
  %v18 = vld [vmem:[%s0 + $0x10] sm:$0xf]
  %v19 = vld [vmem:[%s0 + $0x14] sm:$0xf]
  %v20 = vld [vmem:[%s0 + $0x18] sm:$0xf]
  %v21 = vld [vmem:[%s0 + $0x1c] sm:$0xf]
  %v22 = vld [vmem:[%s0 + $0x20] sm:$0xf]
  %v23 = vld [vmem:[%s0 + $0x24] sm:$0xf]
  %v24 = vld [vmem:[%s0 + $0x28] sm:$0xf]
  %v25 = vld [vmem:[%s0 + $0x2c] sm:$0xf]
  %v26 = vld [vmem:[%s0 + $0x30] sm:$0xf]
  %v27 = vld [vmem:[%s0 + $0x34] sm:$0xf]
  %v28 = vld [vmem:[%s0 + $0x38] sm:$0xf]
  %v29 = vld [vmem:[%s0 + $0x3c] sm:$0xf]
  %v30 = vld [vmem:[%s1] sm:$0xf]
  %v31 = vld [vmem:[%s1 + $0x4] sm:$0xf]
  %v32 = vld [vmem:[%s1 + $0x8] sm:$0xf]
  %v33 = vld [vmem:[%s1 + $0xc] sm:$0xf]
  %v34 = vld [vmem:[%s1 + $0x10] sm:$0xf]
  %v35 = vld [vmem:[%s1 + $0x14] sm:$0xf]
  %v36 = vld [vmem:[%s1 + $0x18] sm:$0xf]
  %v37 = vld [vmem:[%s1 + $0x1c] sm:$0xf]
  %v38 = vld [vmem:[%s1 + $0x20] sm:$0xf]
  %v39 = vld [vmem:[%s1 + $0x24] sm:$0xf]
  %v40 = vld [vmem:[%s1 + $0x28] sm:$0xf]
  %v41 = vld [vmem:[%s1 + $0x2c] sm:$0xf]
  %v42 = vld [vmem:[%s1 + $0x30] sm:$0xf]
  %v43 = vld [vmem:[%s1 + $0x34] sm:$0xf]
  %v44 = vld [vmem:[%s1 + $0x38] sm:$0xf]
  %v45 = vld [vmem:[%s1 + $0x3c] sm:$0xf]
  %v62 = vunpack.c.l.b16 %v14
  %v63 = vunpack.c.l.b16 %v15
  %v64 = vunpack.c.l.b16 %v16
  %v65 = vunpack.c.l.b16 %v17
  %v66 = vunpack.c.l.b16 %v18
  %v67 = vunpack.c.l.b16 %v19
  %v68 = vunpack.c.l.b16 %v20
  %v69 = vunpack.c.l.b16 %v21
  %v70 = vunpack.c.l.b16 %v22
  %v71 = vunpack.c.l.b16 %v23
  %v72 = vunpack.c.l.b16 %v24
  %v73 = vunpack.c.l.b16 %v25
  %v74 = vunpack.c.l.b16 %v26
  %v75 = vunpack.c.l.b16 %v27
  %v76 = vunpack.c.l.b16 %v28
  %v77 = vunpack.c.l.b16 %v29
  %v78 = vpack.c.b16 %v63, %v62
  %v79 = vpack.c.b16 %v65, %v64
  %v80 = vpack.c.b16 %v67, %v66
  %v81 = vpack.c.b16 %v69, %v68
  %v82 = vpack.c.b16 %v71, %v70
  %v83 = vpack.c.b16 %v73, %v72
  %v84 = vpack.c.b16 %v75, %v74
  %v85 = vpack.c.b16 %v77, %v76
  %v110 = vunpack.c.l.b16 %v30
  %v111 = vunpack.c.l.b16 %v31
  %v112 = vunpack.c.l.b16 %v32
  %v113 = vunpack.c.l.b16 %v33
  %v114 = vunpack.c.l.b16 %v34
  %v115 = vunpack.c.l.b16 %v35
  %v116 = vunpack.c.l.b16 %v36
  %v117 = vunpack.c.l.b16 %v37
  %v118 = vunpack.c.l.b16 %v38
  %v119 = vunpack.c.l.b16 %v39
  %v120 = vunpack.c.l.b16 %v40
  %v121 = vunpack.c.l.b16 %v41
  %v122 = vunpack.c.l.b16 %v42
  %v123 = vunpack.c.l.b16 %v43
  %v124 = vunpack.c.l.b16 %v44
  %v125 = vunpack.c.l.b16 %v45
  %v126 = vpack.c.b16 %v111, %v110
  %v127 = vpack.c.b16 %v113, %v112
  %v128 = vpack.c.b16 %v115, %v114
  %v129 = vpack.c.b16 %v117, %v116
  %v130 = vpack.c.b16 %v119, %v118
  %v131 = vpack.c.b16 %v121, %v120
  %v132 = vpack.c.b16 %v123, %v122
  %v133 = vpack.c.b16 %v125, %v124
  %142 = vmatpush.bf16.msra.mxu0 %v133
  %143 = vmatpush.bf16.msra.mxu0 %v132
  %144 = vmatpush.bf16.msra.mxu0 %v131
  %145 = vmatpush.bf16.msra.mxu0 %v130
  %146 = vmatpush.bf16.msra.mxu0 %v129
  %147 = vmatpush.bf16.msra.mxu0 %v128
  %148 = vmatpush.bf16.msra.mxu0 %v127
  %149 = vmatpush.bf16.msra.mxu0 %v126
  %150 = vmatmul.bf16.gmra.mxu0 %v78
  %v151 = vpop.f32.mrf.mxu0
  %v152 = vadd.f32 0.0, %v151
  %v153 = vpop.f32.mrf.mxu0
  %v154 = vadd.f32 0.0, %v153
  %155 = vmatmul.bf16.gmra.mxu0 %v79
  %v156 = vpop.f32.mrf.mxu0
  %v157 = vadd.f32 0.0, %v156
  %v158 = vpop.f32.mrf.mxu0
  %v159 = vadd.f32 0.0, %v158
  %160 = vmatmul.bf16.gmra.mxu0 %v80
  %v161 = vpop.f32.mrf.mxu0
  %v162 = vadd.f32 0.0, %v161
  %v163 = vpop.f32.mrf.mxu0
  %v164 = vadd.f32 0.0, %v163
  %165 = vmatmul.bf16.gmra.mxu0 %v81
  %v166 = vpop.f32.mrf.mxu0
  %v167 = vadd.f32 0.0, %v166
  %v168 = vpop.f32.mrf.mxu0
  %v169 = vadd.f32 0.0, %v168
  %170 = vmatmul.bf16.gmra.mxu0 %v82
  %v171 = vpop.f32.mrf.mxu0
  %v172 = vadd.f32 0.0, %v171
  %v173 = vpop.f32.mrf.mxu0
  %v174 = vadd.f32 0.0, %v173
  %175 = vmatmul.bf16.gmra.mxu0 %v83
  %v176 = vpop.f32.mrf.mxu0
  %v177 = vadd.f32 0.0, %v176
  %v178 = vpop.f32.mrf.mxu0
  %v179 = vadd.f32 0.0, %v178
  %180 = vmatmul.bf16.gmra.mxu0 %v84
  %v181 = vpop.f32.mrf.mxu0
  %v182 = vadd.f32 0.0, %v181
  %v183 = vpop.f32.mrf.mxu0
  %v184 = vadd.f32 0.0, %v183
  %185 = vmatmul.bf16.gmra.mxu0 %v85
  %v186 = vpop.f32.mrf.mxu0
  %v187 = vadd.f32 0.0, %v186
  %v188 = vpop.f32.mrf.mxu0
  %v189 = vadd.f32 0.0, %v188
  %190 = vdwg.mxu0
  %191 = vst [vmem:[%s2] sm:$0xff] %v152
  %192 = vst [vmem:[%s2 + $0x8] sm:$0xff] %v154
  %193 = vst [vmem:[%s2 + $0x10] sm:$0xff] %v157
  %194 = vst [vmem:[%s2 + $0x18] sm:$0xff] %v159
  %195 = vst [vmem:[%s2 + $0x20] sm:$0xff] %v162
  %196 = vst [vmem:[%s2 + $0x28] sm:$0xff] %v164
  %197 = vst [vmem:[%s2 + $0x30] sm:$0xff] %v167
  %198 = vst [vmem:[%s2 + $0x38] sm:$0xff] %v169
  %199 = vst [vmem:[%s2 + $0x40] sm:$0xff] %v172
  %200 = vst [vmem:[%s2 + $0x48] sm:$0xff] %v174
  %201 = vst [vmem:[%s2 + $0x50] sm:$0xff] %v177
  %202 = vst [vmem:[%s2 + $0x58] sm:$0xff] %v179
  %203 = vst [vmem:[%s2 + $0x60] sm:$0xff] %v182
  %204 = vst [vmem:[%s2 + $0x68] sm:$0xff] %v184
  %205 = vst [vmem:[%s2 + $0x70] sm:$0xff] %v187
  %206 = vst [vmem:[%s2 + $0x78] sm:$0xff] %v189
  %p207 = scmp.eq.s32.totalorder 0, 0
  // Predicated region
  $region10: #{_lambda_.5} parent=0 // pred_check
    %p208 = pneg %p207
  $region11: #{_lambda_.5} parent=0 // pred_check_branch
    %210 = sbr.rel (%p208) target = $region13
  $region12: #{_lambda_.5} parent=0 // pred_region
    %211 = vst [vmem:[%s3] sm:$0x1] 0.0
    %212 = vst [vmem:[%s4] sm:$0x1] 0.0
  $region13: #{_lambda_.5} parent=0 // pred_fallthru
    _
  %v213 = vld [vmem:[%s3] sm:$0x1]
  %v214 = vadd.f32 %v152, %v154
  %v215 = vadd.f32 %v214, %v157
  %v216 = vadd.f32 %v215, %v159
  %v217 = vadd.f32 %v216, %v162
  %v218 = vadd.f32 %v217, %v164
  %v219 = vadd.f32 %v218, %v167
  %v220 = vadd.f32 %v219, %v169
  %v221 = vadd.f32 %v220, %v172
  %v222 = vadd.f32 %v221, %v174
  %v223 = vadd.f32 %v222, %v177
  %v224 = vadd.f32 %v223, %v179
  %v225 = vadd.f32 %v224, %v182
  %v226 = vadd.f32 %v225, %v184
  %v227 = vadd.f32 %v226, %v187
  %v228 = vadd.f32 %v227, %v189
  %v229 = vrot.slane %v228, 4
  %v230 = vadd.f32 %v228, %v229
  %v231 = vrot.slane %v230, 2
  %v232 = vadd.f32 %v230, %v231
  %v233 = vrot.slane %v232, 1
  %v234 = vadd.f32 %v232, %v233
  %v235 = vadd.f32 %v213, %v234
  %236 = vst [vmem:[%s3] sm:$0x1] %v235
  %v237 = vld [vmem:[%s4] sm:$0x1]
  %v238 = vmul.f32 %v152, %v152
  %v239 = vmul.f32 %v154, %v154
  %v240 = vmul.f32 %v157, %v157
  %v241 = vmul.f32 %v159, %v159
  %v242 = vmul.f32 %v162, %v162
  %v243 = vmul.f32 %v164, %v164
  %v244 = vmul.f32 %v167, %v167
  %v245 = vmul.f32 %v169, %v169
  %v246 = vmul.f32 %v172, %v172
  %v247 = vmul.f32 %v174, %v174
  %v248 = vmul.f32 %v177, %v177
  %v249 = vmul.f32 %v179, %v179
  %v250 = vmul.f32 %v182, %v182
  %v251 = vmul.f32 %v184, %v184
  %v252 = vmul.f32 %v187, %v187
  %v253 = vmul.f32 %v189, %v189
  %v254 = vadd.f32 %v238, %v239
  %v255 = vadd.f32 %v254, %v240
  %v256 = vadd.f32 %v255, %v241
  %v257 = vadd.f32 %v256, %v242
  %v258 = vadd.f32 %v257, %v243
  %v259 = vadd.f32 %v258, %v244
  %v260 = vadd.f32 %v259, %v245
  %v261 = vadd.f32 %v260, %v246
  %v262 = vadd.f32 %v261, %v247
  %v263 = vadd.f32 %v262, %v248
  %v264 = vadd.f32 %v263, %v249
  %v265 = vadd.f32 %v264, %v250
  %v266 = vadd.f32 %v265, %v251
  %v267 = vadd.f32 %v266, %v252
  %v268 = vadd.f32 %v267, %v253
  %v269 = vrot.slane %v268, 4
  %v270 = vadd.f32 %v268, %v269
  %v271 = vrot.slane %v270, 2
  %v272 = vadd.f32 %v270, %v271
  %v273 = vrot.slane %v272, 1
  %v274 = vadd.f32 %v272, %v273
  %v275 = vadd.f32 %v237, %v274
  %276 = vst [vmem:[%s4] sm:$0x1] %v275
  // Predicated region
  $region14: #{_lambda_.5} parent=0 // pred_check
    _
  $region15: #{_lambda_.5} parent=0 // pred_check_branch
    %278 = sbr.rel (0) target = $region17
  $region16: #{_lambda_.5} parent=0 // pred_region
    _
  $region17: #{_lambda_.5} parent=0 // pred_fallthru
    _
  // Predicated region
  $region18: #{_lambda_.5} parent=0 // pred_check
    _
  $region19: #{_lambda_.5} parent=0 // pred_check_branch
    %280 = sbr.rel (0) target = $region21
  $region20: #{_lambda_.5} parent=0 // pred_region
    _
  $region21: #{_lambda_.5} parent=0 // pred_fallthru
    _
  // Predicated region
  $region22: #{_lambda_.5} parent=0 // pred_check
    _
  $region23: #{_lambda_.5} parent=0 // pred_check_branch
    %282 = sbr.rel (0) target = $region25
  $region24: #{_lambda_.5} parent=0 // pred_region
    _
  $region25: #{_lambda_.5} parent=0 // pred_fallthru
    _
  // Predicated region
  $region26: #{_lambda_.5} parent=0 // pred_check
    _
  $region27: #{_lambda_.5} parent=0 // pred_check_branch
    %284 = sbr.rel (0) target = $region29
  $region28: #{_lambda_.5} parent=0 // pred_region
    _
  $region29: #{_lambda_.5} parent=0 // pred_fallthru
    _
  // Predicated region
  $region30: #{_lambda_.5} parent=0 // pred_check
    _
  $region31: #{_lambda_.5} parent=0 // pred_check_branch
    %286 = sbr.rel (0) target = $region33
  $region32: #{_lambda_.5} parent=0 // pred_region
    _
  $region33: #{_lambda_.5} parent=0 // pred_fallthru
    _
  // Predicated region
  $region34: #{_lambda_.5} parent=0 // pred_check
    _
  $region35: #{_lambda_.5} parent=0 // pred_check_branch
    %288 = sbr.rel (0) target = $region37
  $region36: #{_lambda_.5} parent=0 // pred_region
    _
  $region37: #{_lambda_.5} parent=0 // pred_fallthru
    _

// kernel: _lambda_.9
$region0: #{_lambda_.9}
  #allocation0 [shape = 'u32[]', space=smem, size = 0x4, offset = 0x4, fixed_abs, tag = 'smem constant byte address 0x4 - core index']
  #allocation1 [shape = 'u32[72,128]{1,0:T(1,128)}', space=vmem, size = 0x9000, scoped, tag = 'internal scratch']
  %s0 = inlined_call_operand.vmem [shape: f32[128,128], index: 0, kind: input, shape index: {}]
  %s1 = inlined_call_operand.vmem [shape: f32[128,128], index: 1, kind: input, shape index: {}]
  %s2 = inlined_call_operand.vmem [shape: f32[1,128], index: 2, kind: input, shape index: {}]
  %s3 = inlined_call_operand.vmem [shape: f32[1,128], index: 3, kind: input, shape index: {}]
  %s4 = inlined_call_operand.vmem [shape: f32[1,128], index: 4, kind: input, shape index: {}]
  %s5 = inlined_call_operand.vmem [shape: f32[128,128], index: 5, kind: output, shape index: {}]
  %s6 = sld [smem:[#allocation0]]
  $region30: #{_lambda_.9} parent=0
    _
  %s8 = ssub.s32 1, %s6
  %s9 = scalar_select 0, %s8, %s6
  // Predicated region
  $region2: #{_lambda_.9} parent=0 // pred_check
    _
  $region3: #{_lambda_.9} parent=0 // pred_check_branch
    %11 = sbr.rel (0) target = $region5
  $region4: #{_lambda_.9} parent=0 // pred_region
    _
  $region5: #{_lambda_.9} parent=0 // pred_fallthru
    _
  // Predicated region
  $region6: #{_lambda_.9} parent=0 // pred_check
    _
  $region7: #{_lambda_.9} parent=0 // pred_check_branch
    %13 = sbr.rel (0) target = $region9
  $region8: #{_lambda_.9} parent=0 // pred_region
    _
  $region9: #{_lambda_.9} parent=0 // pred_fallthru
    _
  // Predicated region
  $region10: #{_lambda_.9} parent=0 // pred_check
    _
  $region11: #{_lambda_.9} parent=0 // pred_check_branch
    %15 = sbr.rel (0) target = $region13
  $region12: #{_lambda_.9} parent=0 // pred_region
    _
  $region13: #{_lambda_.9} parent=0 // pred_fallthru
    _
  // Predicated region
  $region14: #{_lambda_.9} parent=0 // pred_check
    _
  $region15: #{_lambda_.9} parent=0 // pred_check_branch
    %17 = sbr.rel (0) target = $region17
  $region16: #{_lambda_.9} parent=0 // pred_region
    _
  $region17: #{_lambda_.9} parent=0 // pred_fallthru
    _
  // Predicated region
  $region18: #{_lambda_.9} parent=0 // pred_check
    _
  $region19: #{_lambda_.9} parent=0 // pred_check_branch
    %19 = sbr.rel (0) target = $region21
  $region20: #{_lambda_.9} parent=0 // pred_region
    _
  $region21: #{_lambda_.9} parent=0 // pred_fallthru
    _
  %v20 = vld [vmem:[%s0] sm:$0xff]
  %v21 = vld [vmem:[%s0 + $0x8] sm:$0xff]
  %v22 = vld [vmem:[%s0 + $0x10] sm:$0xff]
  %v23 = vld [vmem:[%s0 + $0x18] sm:$0xff]
  %v24 = vld [vmem:[%s0 + $0x20] sm:$0xff]
  %v25 = vld [vmem:[%s0 + $0x28] sm:$0xff]
  %v26 = vld [vmem:[%s0 + $0x30] sm:$0xff]
  %v27 = vld [vmem:[%s0 + $0x38] sm:$0xff]
  %v28 = vld [vmem:[%s0 + $0x40] sm:$0xff]
  %v29 = vld [vmem:[%s0 + $0x48] sm:$0xff]
  %v30 = vld [vmem:[%s0 + $0x50] sm:$0xff]
  %v31 = vld [vmem:[%s0 + $0x58] sm:$0xff]
  %v32 = vld [vmem:[%s0 + $0x60] sm:$0xff]
  %v33 = vld [vmem:[%s0 + $0x68] sm:$0xff]
  %v34 = vld [vmem:[%s0 + $0x70] sm:$0xff]
  %v35 = vld [vmem:[%s0 + $0x78] sm:$0xff]
  %v36 = vld [vmem:[%s2] sm:$0x1]
  %v38 = vperm.slane %v36, 0
  %v40 = vmul.f32 %v20, %v38
  %v41 = vmul.f32 %v21, %v38
  %v42 = vmul.f32 %v22, %v38
  %v43 = vmul.f32 %v23, %v38
  %v44 = vmul.f32 %v24, %v38
  %v45 = vmul.f32 %v25, %v38
  %v46 = vmul.f32 %v26, %v38
  %v47 = vmul.f32 %v27, %v38
  %v48 = vmul.f32 %v28, %v38
  %v49 = vmul.f32 %v29, %v38
  %v50 = vmul.f32 %v30, %v38
  %v51 = vmul.f32 %v31, %v38
  %v52 = vmul.f32 %v32, %v38
  %v53 = vmul.f32 %v33, %v38
  %v54 = vmul.f32 %v34, %v38
  %v55 = vmul.f32 %v35, %v38
  %v56 = vld [vmem:[%s1] sm:$0xff]
  %v57 = vld [vmem:[%s1 + $0x8] sm:$0xff]
  %v58 = vld [vmem:[%s1 + $0x10] sm:$0xff]
  %v59 = vld [vmem:[%s1 + $0x18] sm:$0xff]
  %v60 = vld [vmem:[%s1 + $0x20] sm:$0xff]
  %v61 = vld [vmem:[%s1 + $0x28] sm:$0xff]
  %v62 = vld [vmem:[%s1 + $0x30] sm:$0xff]
  %v63 = vld [vmem:[%s1 + $0x38] sm:$0xff]
  %v64 = vld [vmem:[%s1 + $0x40] sm:$0xff]
  %v65 = vld [vmem:[%s1 + $0x48] sm:$0xff]
  %v66 = vld [vmem:[%s1 + $0x50] sm:$0xff]
  %v67 = vld [vmem:[%s1 + $0x58] sm:$0xff]
  %v68 = vld [vmem:[%s1 + $0x60] sm:$0xff]
  %v69 = vld [vmem:[%s1 + $0x68] sm:$0xff]
  %v70 = vld [vmem:[%s1 + $0x70] sm:$0xff]
  %v71 = vld [vmem:[%s1 + $0x78] sm:$0xff]
  %v72 = vld [vmem:[%s3] sm:$0x1]
  %v74 = vperm.slane %v72, 0
  %v76 = vmul.f32 %v56, %v74
  %v77 = vmul.f32 %v57, %v74
  %v78 = vmul.f32 %v58, %v74
  %v79 = vmul.f32 %v59, %v74
  %v80 = vmul.f32 %v60, %v74
  %v81 = vmul.f32 %v61, %v74
  %v82 = vmul.f32 %v62, %v74
  %v83 = vmul.f32 %v63, %v74
  %v84 = vmul.f32 %v64, %v74
  %v85 = vmul.f32 %v65, %v74
  %v86 = vmul.f32 %v66, %v74
  %v87 = vmul.f32 %v67, %v74
  %v88 = vmul.f32 %v68, %v74
  %v89 = vmul.f32 %v69, %v74
  %v90 = vmul.f32 %v70, %v74
  %v91 = vmul.f32 %v71, %v74
  %v92 = vadd.f32 %v40, %v76
  %v93 = vadd.f32 %v41, %v77
  %v94 = vadd.f32 %v42, %v78
  %v95 = vadd.f32 %v43, %v79
  %v96 = vadd.f32 %v44, %v80
  %v97 = vadd.f32 %v45, %v81
  %v98 = vadd.f32 %v46, %v82
  %v99 = vadd.f32 %v47, %v83
  %v100 = vadd.f32 %v48, %v84
  %v101 = vadd.f32 %v49, %v85
  %v102 = vadd.f32 %v50, %v86
  %v103 = vadd.f32 %v51, %v87
  %v104 = vadd.f32 %v52, %v88
  %v105 = vadd.f32 %v53, %v89
  %v106 = vadd.f32 %v54, %v90
  %v107 = vadd.f32 %v55, %v91
  %v108 = vld [vmem:[%s4] sm:$0x1]
  %v110 = vperm.slane %v108, 0
  %v112 = vadd.f32 %v92, %v110
  %v113 = vadd.f32 %v93, %v110
  %v114 = vadd.f32 %v94, %v110
  %v115 = vadd.f32 %v95, %v110
  %v116 = vadd.f32 %v96, %v110
  %v117 = vadd.f32 %v97, %v110
  %v118 = vadd.f32 %v98, %v110
  %v119 = vadd.f32 %v99, %v110
  %v120 = vadd.f32 %v100, %v110
  %v121 = vadd.f32 %v101, %v110
  %v122 = vadd.f32 %v102, %v110
  %v123 = vadd.f32 %v103, %v110
  %v124 = vadd.f32 %v104, %v110
  %v125 = vadd.f32 %v105, %v110
  %v126 = vadd.f32 %v106, %v110
  %v127 = vadd.f32 %v107, %v110
  %v128 = vmax.f32 %v112, 0.0
  %v129 = vmax.f32 %v113, 0.0
  %v130 = vmax.f32 %v114, 0.0
  %v131 = vmax.f32 %v115, 0.0
  %v132 = vmax.f32 %v116, 0.0
  %v133 = vmax.f32 %v117, 0.0
  %v134 = vmax.f32 %v118, 0.0
  %v135 = vmax.f32 %v119, 0.0
  %v136 = vmax.f32 %v120, 0.0
  %v137 = vmax.f32 %v121, 0.0
  %v138 = vmax.f32 %v122, 0.0
  %v139 = vmax.f32 %v123, 0.0
  %v140 = vmax.f32 %v124, 0.0
  %v141 = vmax.f32 %v125, 0.0
  %v142 = vmax.f32 %v126, 0.0
  %v143 = vmax.f32 %v127, 0.0
  %144 = vst [vmem:[%s5] sm:$0xff] %v128
  %145 = vst [vmem:[%s5 + $0x8] sm:$0xff] %v129
  %146 = vst [vmem:[%s5 + $0x10] sm:$0xff] %v130
  %147 = vst [vmem:[%s5 + $0x18] sm:$0xff] %v131
  %148 = vst [vmem:[%s5 + $0x20] sm:$0xff] %v132
  %149 = vst [vmem:[%s5 + $0x28] sm:$0xff] %v133
  %150 = vst [vmem:[%s5 + $0x30] sm:$0xff] %v134
  %151 = vst [vmem:[%s5 + $0x38] sm:$0xff] %v135
  %152 = vst [vmem:[%s5 + $0x40] sm:$0xff] %v136
  %153 = vst [vmem:[%s5 + $0x48] sm:$0xff] %v137
  %154 = vst [vmem:[%s5 + $0x50] sm:$0xff] %v138
  %155 = vst [vmem:[%s5 + $0x58] sm:$0xff] %v139
  %156 = vst [vmem:[%s5 + $0x60] sm:$0xff] %v140
  %157 = vst [vmem:[%s5 + $0x68] sm:$0xff] %v141
  %158 = vst [vmem:[%s5 + $0x70] sm:$0xff] %v142
  %159 = vst [vmem:[%s5 + $0x78] sm:$0xff] %v143
  // Predicated region
  $region22: #{_lambda_.9} parent=0 // pred_check
    _
  $region23: #{_lambda_.9} parent=0 // pred_check_branch
    %161 = sbr.rel (0) target = $region25
  $region24: #{_lambda_.9} parent=0 // pred_region
    _
  $region25: #{_lambda_.9} parent=0 // pred_fallthru
    _
  // Predicated region
  $region26: #{_lambda_.9} parent=0 // pred_check
    _
  $region27: #{_lambda_.9} parent=0 // pred_check_branch
    %163 = sbr.rel (0) target = $region29
  $region28: #{_lambda_.9} parent=0 // pred_region
    _
  $region29: #{_lambda_.9} parent=0 // pred_fallthru
    _

</llo_original>
